<compile_context>
chip_gen: v6e
topology: v6e:2x2x1
jax: 0.10.0
libtpu: 0.0.40
codegen_flags: <defaults>
</compile_context>

<pallas_src>
import functools

import jax
import jax.numpy as jnp
from jax.experimental import pallas as pl
from jax.experimental.pallas import tpu as pltpu


def _cdiv(a, b):
    return -(-a // b)


def _round_up(a, m):
    return _cdiv(a, m) * m


def _critic_kernel(in_x, act_dim, hidden,
                   o_w1x, o_w1a, o_w2, o_w3, o_b,
                   xT_ref, aT_ref, slab_ref, out_ref):
    """One batch tile (batch on lanes): 3 hidden ReLU layers + scalar q head.

    slab_ref layout (f32, LW lanes wide, every section starts on an 8-row
    sublane-tile boundary):
      rows [o_w1x : o_w1x+H]  W1 observation/goal part, (H, in_x) in cols [0,in_x)
      rows [o_w1a : o_w1a+H]  W1 action part (pre-scaled by 1/max_action)
      rows [o_w2  : o_w2 +H]  W2, (H, H)
      rows [o_w3  : o_w3 +H]  W3, (H, H)
      rows [o_b   : o_b  +H]  col0=b1, col1=b2, col2=b3, col3=wq, [0,4]=bq
    """
    xT = xT_ref[...]                                     # (in_x, tb)
    aT = aT_ref[...]                                     # (act,  tb)

    w1x = slab_ref[o_w1x:o_w1x + hidden, 0:in_x]         # (H, in_x)
    w1a = slab_ref[o_w1a:o_w1a + hidden, 0:act_dim]      # (H, act)
    w2 = slab_ref[o_w2:o_w2 + hidden, 0:hidden]          # (H, H)
    w3 = slab_ref[o_w3:o_w3 + hidden, 0:hidden]          # (H, H)
    b1 = slab_ref[o_b:o_b + hidden, 0:1]                 # (H, 1)
    b2 = slab_ref[o_b:o_b + hidden, 1:2]
    b3 = slab_ref[o_b:o_b + hidden, 2:3]
    wq = slab_ref[o_b:o_b + hidden, 3:4]                 # (H, 1) q-head weights
    bq = slab_ref[o_b:o_b + 1, 4:5]                      # (1, 1) q-head bias

    # layer 1: W1 @ cat(x, actions/max_action)^T + b1, realized as two dots
    # against the split (pre-scaled) weight -- no concat, no per-call scale.
    h = (jnp.dot(w1x, xT, preferred_element_type=jnp.float32)
         + jnp.dot(w1a, aT, preferred_element_type=jnp.float32) + b1)
    h = jnp.maximum(h, 0.0)

    # layer 2
    h = jnp.dot(w2, h, preferred_element_type=jnp.float32) + b2
    h = jnp.maximum(h, 0.0)

    # layer 3
    h = jnp.dot(w3, h, preferred_element_type=jnp.float32) + b3
    h = jnp.maximum(h, 0.0)

    # q head: sublane reduce of wq * h -> lane-dense (1, tb) row.
    q = jnp.sum(wq * h, axis=0, keepdims=True) + bq
    out_ref[...] = q.astype(out_ref.dtype)               # unmasked lane-dense


def pack_params(params, max_action, act_dim):
    """One-time packing of PyTorch-layout params into a single f32 slab.

    `max_action` must be a static Python scalar; its reciprocal is folded into
    the action columns of W1 (do NOT pass a traced value).
    """
    f32 = jnp.float32
    w1 = jnp.asarray(params["fc1_w"], f32)               # (H, in_total)
    hidden, in_total = w1.shape
    in_x = in_total - act_dim
    inv_max_action = 1.0 / float(max_action)

    w1x = w1[:, :in_x]                                   # (H, in_x)
    w1a = w1[:, in_x:] * inv_max_action                  # (H, act) pre-scaled
    w2 = jnp.asarray(params["fc2_w"], f32)               # (H, H)
    w3 = jnp.asarray(params["fc3_w"], f32)               # (H, H)
    wq = jnp.asarray(params["q_w"], f32).reshape(-1)     # (H,)
    b1 = jnp.asarray(params["fc1_b"], f32).reshape(-1)
    b2 = jnp.asarray(params["fc2_b"], f32).reshape(-1)
    b3 = jnp.asarray(params["fc3_b"], f32).reshape(-1)
    bq = jnp.asarray(params["q_b"], f32).reshape(())

    hp = _round_up(hidden, 8)                            # sublane-tile aligned
    lw = max(hidden, in_x, act_dim, 8)                   # slab lane width

    def pad_to(a, rows, cols):
        return jnp.pad(a, ((0, rows - a.shape[0]), (0, cols - a.shape[1])))

    bias_blk = jnp.zeros((hp, lw), f32)
    bias_blk = bias_blk.at[:hidden, 0].set(b1)
    bias_blk = bias_blk.at[:hidden, 1].set(b2)
    bias_blk = bias_blk.at[:hidden, 2].set(b3)
    bias_blk = bias_blk.at[:hidden, 3].set(wq)
    bias_blk = bias_blk.at[0, 4].set(bq)

    o_w1x, o_w1a, o_w2, o_w3, o_b = 0, hp, 2 * hp, 3 * hp, 4 * hp
    slab = jnp.concatenate([
        pad_to(w1x, hp, lw),
        pad_to(w1a, hp, lw),
        pad_to(w2, hp, lw),
        pad_to(w3, hp, lw),
        bias_blk,
    ], axis=0)                                           # (5*hp, lw)

    dims = dict(in_x=in_x, act=act_dim, hidden=hidden,
                o_w1x=o_w1x, o_w1a=o_w1a, o_w2=o_w2, o_w3=o_w3, o_b=o_b)
    return {"slab": slab, "dims": dims}


def critic_forward(x, actions, packed, *, max_block_b=4096, target_blocks=1):
    """x: (B, obs+goal), actions: (B, act_dim) -> (B, 1) Q-values.

    target_blocks=1 keeps a single grid step (best on v5e/v6e); pass
    target_blocks=2 on v7x for replay-sized batches so the "parallel" grid
    axis shards across its two TensorCores.
    """
    d = packed["dims"]
    slab = packed["slab"]
    in_x, act_dim, hidden = d["in_x"], d["act"], d["hidden"]
    assert x.shape[1] == in_x and actions.shape[1] == act_dim

    B = x.shape[0]
    n_blocks = max(int(target_blocks), _cdiv(B, max_block_b))
    tb = _round_up(_cdiv(B, n_blocks), 128)              # lane-aligned tile
    Bp = tb * n_blocks

    xT = x.T                                             # (in_x, B)
    aT = actions.T                                       # (act,  B)
    if Bp != B:
        xT = jnp.pad(xT, ((0, 0), (0, Bp - B)))
        aT = jnp.pad(aT, ((0, 0), (0, Bp - B)))

    kernel = functools.partial(
        _critic_kernel, in_x, act_dim, hidden,
        d["o_w1x"], d["o_w1a"], d["o_w2"], d["o_w3"], d["o_b"])

    out = pl.pallas_call(
        kernel,
        out_shape=jax.ShapeDtypeStruct((1, Bp), jnp.float32),
        grid=(n_blocks,),
        in_specs=[
            pl.BlockSpec((in_x, tb), lambda i: (0, i)),
            pl.BlockSpec((act_dim, tb), lambda i: (0, i)),
            # single grid-invariant weight slab (same block index every step)
            pl.BlockSpec(slab.shape, lambda i: (0, 0)),
        ],
        out_specs=pl.BlockSpec((1, tb), lambda i: (0, i)),
        compiler_params=pltpu.CompilerParams(
            dimension_semantics=("parallel",)),
    )(xT, aT, slab)

    return out[0, :B].reshape(B, 1)


def _init_params(key, in_dim, hidden, dtype=jnp.float32):
    """Deterministic synthetic init (PyTorch-like uniform fan-in scaling)."""
    keys = jax.random.split(key, 8)

    def lin(kw, kb, fan_in, fan_out):
        bound = 1.0 / jnp.sqrt(jnp.asarray(fan_in, dtype))
        w = jax.random.uniform(kw, (fan_out, fan_in), dtype, -bound, bound)
        b = jax.random.uniform(kb, (fan_out,), dtype, -bound, bound)
        return w, b

    p = {}
    p["fc1_w"], p["fc1_b"] = lin(keys[0], keys[1], in_dim, hidden)
    p["fc2_w"], p["fc2_b"] = lin(keys[2], keys[3], hidden, hidden)
    p["fc3_w"], p["fc3_b"] = lin(keys[4], keys[5], hidden, hidden)
    p["q_w"], p["q_b"] = lin(keys[6], keys[7], hidden, 1)
    return p


def _reference_forward(x, actions, params, max_action):
    """Plain-JAX reference matching the PyTorch module."""
    xa = jnp.concatenate([x, actions / max_action], axis=1)
    h = jax.nn.relu(xa @ params["fc1_w"].T + params["fc1_b"])
    h = jax.nn.relu(h @ params["fc2_w"].T + params["fc2_b"])
    h = jax.nn.relu(h @ params["fc3_w"].T + params["fc3_b"])
    return h @ params["q_w"].T + params["q_b"]


if __name__ == "__main__":
    # Small shapes implied by the module: observation=8, desired_goal=4,
    # action=4, hidden_units=32, batch=8.
    batch = 8
    obs_size, goal_size, act_size = 8, 4, 4
    hidden_units = 32
    max_action = 2.0

    key = jax.random.PRNGKey(0)
    k_obs, k_act, k_par = jax.random.split(key, 3)

    x = jax.random.normal(k_obs, (batch, obs_size + goal_size), jnp.float32)
    actions = jax.random.normal(k_act, (batch, act_size), jnp.float32)

    params = _init_params(k_par, obs_size + goal_size + act_size, hidden_units)

    # One-time param packing (hoisted out of the per-call path).
    packed = pack_params(params, max_action, act_size)

    q = critic_forward(x, actions, packed)
    q = jax.block_until_ready(q)

    q_ref = _reference_forward(x, actions, params, max_action)
    assert q.shape == (batch, 1)
    assert jnp.allclose(q, q_ref, atol=1e-5, rtol=1e-5), (q, q_ref)

    print("KERNEL_OK")
</pallas_src>

<mosaic_0001>
module attributes {stable_mosaic.version = 11 : i64} {
  func.func @_critic_kernel(%arg0: i32, %arg1: memref<12x128xf32, #tpu.memory_space<vmem>>, %arg2: memref<4x128xf32, #tpu.memory_space<vmem>>, %arg3: memref<160x32xf32, #tpu.memory_space<vmem>>, %arg4: memref<1x128xf32, #tpu.memory_space<vmem>>) attributes {dimension_semantics = [#tpu.dimension_semantics<parallel>], iteration_bounds = array<i64: 1>, scalar_prefetch = 0 : i64, scratch_operands = 0 : i64, tpu.core_type = #tpu.core_type<tc>, window_params = [{transform_indices = @transform_0, window_bounds = array<i64: 12, 128>}, {transform_indices = @transform_1, window_bounds = array<i64: 4, 128>}, {pipeline_mode = #tpu.pipeline_mode<synchronous>, transform_indices = @transform_2, window_bounds = array<i64: 160, 32>}, {transform_indices = @transform_3, window_bounds = array<i64: 1, 128>}]} {
    %c0 = arith.constant 0 : index
    %c0_0 = arith.constant 0 : index
    %0 = vector.load %arg1[%c0, %c0_0] : memref<12x128xf32, #tpu.memory_space<vmem>>, vector<12x128xf32>
    %c0_1 = arith.constant 0 : index
    %c0_2 = arith.constant 0 : index
    %1 = vector.load %arg2[%c0_1, %c0_2] : memref<4x128xf32, #tpu.memory_space<vmem>>, vector<4x128xf32>
    %c0_3 = arith.constant 0 : index
    %c0_4 = arith.constant 0 : index
    %2 = vector.load %arg3[%c0_3, %c0_4] : memref<160x32xf32, #tpu.memory_space<vmem>>, vector<32x12xf32>
    %c32 = arith.constant 32 : index
    %c0_5 = arith.constant 0 : index
    %3 = vector.load %arg3[%c32, %c0_5] : memref<160x32xf32, #tpu.memory_space<vmem>>, vector<32x4xf32>
    %c64 = arith.constant 64 : index
    %c0_6 = arith.constant 0 : index
    %4 = vector.load %arg3[%c64, %c0_6] : memref<160x32xf32, #tpu.memory_space<vmem>>, vector<32x32xf32>
    %c96 = arith.constant 96 : index
    %c0_7 = arith.constant 0 : index
    %5 = vector.load %arg3[%c96, %c0_7] : memref<160x32xf32, #tpu.memory_space<vmem>>, vector<32x32xf32>
    %c128 = arith.constant 128 : index
    %c0_8 = arith.constant 0 : index
    %6 = vector.load %arg3[%c128, %c0_8] : memref<160x32xf32, #tpu.memory_space<vmem>>, vector<32x1xf32>
    %c128_9 = arith.constant 128 : index
    %c1 = arith.constant 1 : index
    %7 = vector.load %arg3[%c128_9, %c1] : memref<160x32xf32, #tpu.memory_space<vmem>>, vector<32x1xf32>
    %c128_10 = arith.constant 128 : index
    %c2 = arith.constant 2 : index
    %8 = vector.load %arg3[%c128_10, %c2] : memref<160x32xf32, #tpu.memory_space<vmem>>, vector<32x1xf32>
    %c128_11 = arith.constant 128 : index
    %c3 = arith.constant 3 : index
    %9 = vector.load %arg3[%c128_11, %c3] : memref<160x32xf32, #tpu.memory_space<vmem>>, vector<32x1xf32>
    %c128_12 = arith.constant 128 : index
    %c4 = arith.constant 4 : index
    %10 = vector.load %arg3[%c128_12, %c4] : memref<160x32xf32, #tpu.memory_space<vmem>>, vector<1x1xf32>
    %cst = arith.constant dense<0.000000e+00> : vector<32x128xf32>
    %11 = tpu.matmul %2, %0, %cst {dimension_numbers = #tpu.dot_dimension_numbers<[1], [0], [0], [1], [0, 0, 1, 1], [], []>} : vector<32x12xf32>, vector<12x128xf32>, vector<32x128xf32> -> vector<32x128xf32>
    %cst_13 = arith.constant dense<0.000000e+00> : vector<32x128xf32>
    %12 = tpu.matmul %3, %1, %cst_13 {dimension_numbers = #tpu.dot_dimension_numbers<[1], [0], [0], [1], [0, 0, 1, 1], [], []>} : vector<32x4xf32>, vector<4x128xf32>, vector<32x128xf32> -> vector<32x128xf32>
    %13 = arith.addf %11, %12 : vector<32x128xf32>
    %14 = vector.broadcast %6 : vector<32x1xf32> to vector<32x128xf32>
    %15 = arith.addf %13, %14 : vector<32x128xf32>
    %cst_14 = arith.constant 0.000000e+00 : f32
    %16 = vector.broadcast %cst_14 : f32 to vector<32x128xf32>
    %17 = arith.maximumf %15, %16 : vector<32x128xf32>
    %cst_15 = arith.constant dense<0.000000e+00> : vector<32x128xf32>
    %18 = tpu.matmul %4, %17, %cst_15 {dimension_numbers = #tpu.dot_dimension_numbers<[1], [0], [0], [1], [0, 0, 1, 1], [], []>} : vector<32x32xf32>, vector<32x128xf32>, vector<32x128xf32> -> vector<32x128xf32>
    %19 = vector.broadcast %7 : vector<32x1xf32> to vector<32x128xf32>
    %20 = arith.addf %18, %19 : vector<32x128xf32>
    %cst_16 = arith.constant 0.000000e+00 : f32
    %21 = vector.broadcast %cst_16 : f32 to vector<32x128xf32>
    %22 = arith.maximumf %20, %21 : vector<32x128xf32>
    %cst_17 = arith.constant dense<0.000000e+00> : vector<32x128xf32>
    %23 = tpu.matmul %5, %22, %cst_17 {dimension_numbers = #tpu.dot_dimension_numbers<[1], [0], [0], [1], [0, 0, 1, 1], [], []>} : vector<32x32xf32>, vector<32x128xf32>, vector<32x128xf32> -> vector<32x128xf32>
    %24 = vector.broadcast %8 : vector<32x1xf32> to vector<32x128xf32>
    %25 = arith.addf %23, %24 : vector<32x128xf32>
    %cst_18 = arith.constant 0.000000e+00 : f32
    %26 = vector.broadcast %cst_18 : f32 to vector<32x128xf32>
    %27 = arith.maximumf %25, %26 : vector<32x128xf32>
    %28 = vector.broadcast %9 : vector<32x1xf32> to vector<32x128xf32>
    %29 = arith.mulf %28, %27 : vector<32x128xf32>
    %cst_19 = arith.constant dense<0.000000e+00> : vector<128xf32>
    %30 = vector.multi_reduction <add>, %29, %cst_19 [0] : vector<32x128xf32> to vector<128xf32>
    %31 = vector.shape_cast %30 : vector<128xf32> to vector<1x128xf32>
    %32 = vector.broadcast %10 : vector<1x1xf32> to vector<1x128xf32>
    %33 = arith.addf %31, %32 : vector<1x128xf32>
    %c0_20 = arith.constant 0 : index
    %c0_21 = arith.constant 0 : index
    %34 = vector.load %arg4[%c0_20, %c0_21] : memref<1x128xf32, #tpu.memory_space<vmem>>, vector<1x128xf32>
    tpu.vector_store %arg4[%c0_20, %c0_21], %33 {strides = array<i32>} : memref<1x128xf32, #tpu.memory_space<vmem>>, vector<1x128xf32>,
    return
  }
  func.func @transform_0(%arg0: i32) -> (i32, i32) {
    %c0_i32 = arith.constant 0 : i32
    %c0_i32_0 = arith.constant 0 : i32
    return %c0_i32, %arg0 : i32, i32
  }
  func.func @transform_1(%arg0: i32) -> (i32, i32) {
    %c0_i32 = arith.constant 0 : i32
    %c0_i32_0 = arith.constant 0 : i32
    return %c0_i32, %arg0 : i32, i32
  }
  func.func @transform_2(%arg0: i32) -> (i32, i32) {
    %c0_i32 = arith.constant 0 : i32
    %c0_i32_0 = arith.constant 0 : i32
    %c0_i32_1 = arith.constant 0 : i32
    return %c0_i32, %c0_i32_0 : i32, i32
  }
  func.func @transform_3(%arg0: i32) -> (i32, i32) {
    %c0_i32 = arith.constant 0 : i32
    %c0_i32_0 = arith.constant 0 : i32
    return %c0_i32, %arg0 : i32, i32
  }
}

</mosaic_0001>

<llo_original>
// kernel: tpu_custom_call.1
$region0: #{tpu_custom_call.1}
  #allocation0 [shape = 'u32[]', space=smem, size = 0x4, offset = 0x4, fixed_abs, tag = 'smem constant byte address 0x4 - core index']
  #allocation1 [shape = 'u32[144,128]{1,0:T(1,128)}', space=vmem, size = 0x12000, scoped, tag = 'internal scratch']
  %s0 = inlined_call_operand.vmem [shape: f32[12,128], index: 0, kind: input, shape index: {}]
  %s1 = inlined_call_operand.vmem [shape: f32[4,128], index: 1, kind: input, shape index: {}]
  %s2 = inlined_call_operand.vmem [shape: f32[160,32], index: 2, kind: input, shape index: {}]
  %s3 = inlined_call_operand.hbm [shape: f32[1,128], index: 3, kind: output, shape index: {}]
  %s4 = sld [smem:[#allocation0]]
  $region22: #{tpu_custom_call.1} parent=0
    _
  %s6 = ssub.s32 1, %s4
  %s7 = scalar_select 0, %s6, %s4
  $region1: #{tpu_custom_call.1} parent=0
    #allocation2 [shape = 'u8[512]{0}', space=vmem, size = 0x400, scoped, tag = 'output window, operand 0, single buffered']
    #allocation3 [shape = 's32[1]{0}', space=sflag, size = 0x4, scoped, tag = 'scoped memory for tpu_custom_call.1']
    %8 = vsyncpa [#allocation3], 0
    // Predicated region
    $region2: #{tpu_custom_call.1} parent=1 // pred_check
      _
    $region3: #{tpu_custom_call.1} parent=1 // pred_check_branch
      %10 = sbr.rel (0) target = $region5
    $region4: #{tpu_custom_call.1} parent=1 // pred_region
      _
    $region5: #{tpu_custom_call.1} parent=1 // pred_fallthru
      _
    // Predicated region
    $region6: #{tpu_custom_call.1} parent=1 // pred_check
      _
    $region7: #{tpu_custom_call.1} parent=1 // pred_check_branch
      %12 = sbr.rel (0) target = $region9
    $region8: #{tpu_custom_call.1} parent=1 // pred_region
      _
    $region9: #{tpu_custom_call.1} parent=1 // pred_fallthru
      _
    // Predicated region
    $region10: #{tpu_custom_call.1} parent=1 // pred_check
      _
    $region11: #{tpu_custom_call.1} parent=1 // pred_check_branch
      %14 = sbr.rel (0) target = $region13
    $region12: #{tpu_custom_call.1} parent=1 // pred_region
      _
    $region13: #{tpu_custom_call.1} parent=1 // pred_fallthru
      _
    %v15 = vld [vmem:[%s0] sm:$0xff]
    %v16 = vld [vmem:[%s0 + $0x8] sm:$0xf]
    %v17 = vld [vmem:[%s1] sm:$0xf]
    %v18 = vld [vmem:[%s2] sm:$0xff]
    %v19 = vld [vmem:[%s2 + $0x8] sm:$0xff]
    %v20 = vld [vmem:[%s2 + $0x10] sm:$0xff]
    %v21 = vld [vmem:[%s2 + $0x18] sm:$0xff]
    %v22 = vld [vmem:[%s2 + $0x20] sm:$0xff]
    %v23 = vld [vmem:[%s2 + $0x28] sm:$0xff]
    %v24 = vld [vmem:[%s2 + $0x30] sm:$0xff]
    %v25 = vld [vmem:[%s2 + $0x38] sm:$0xff]
    %v26 = vld [vmem:[%s2 + $0x40] sm:$0xff]
    %v27 = vld [vmem:[%s2 + $0x48] sm:$0xff]
    %v28 = vld [vmem:[%s2 + $0x50] sm:$0xff]
    %v29 = vld [vmem:[%s2 + $0x58] sm:$0xff]
    %v30 = vld [vmem:[%s2 + $0x60] sm:$0xff]
    %v31 = vld [vmem:[%s2 + $0x68] sm:$0xff]
    %v32 = vld [vmem:[%s2 + $0x70] sm:$0xff]
    %v33 = vld [vmem:[%s2 + $0x78] sm:$0xff]
    %v34 = vld [vmem:[%s2 + $0x80] sm:$0xff]
    %v35 = vld [vmem:[%s2 + $0x88] sm:$0xff]
    %v36 = vld [vmem:[%s2 + $0x90] sm:$0xff]
    %v37 = vld [vmem:[%s2 + $0x98] sm:$0xff]
    %v38 = vld [vmem:[%s2 + $0x80] sm:$0x1]
    %vm39 = vcmask 31744
    %v41 = vsel %vm39, %v22, 0
    %v44 = vsel %vm39, %v23, 0
    %v47 = vsel %vm39, %v24, 0
    %v50 = vsel %vm39, %v25, 0
    %vm52 = vcmask 1043456
    %v54 = vsel %vm52, %v17, 0
    %56 = vmatprep.subr.mxu0 0.0
    %57 = vmatpush1.msra.mxu0 0.0
    %58 = vmatprep.subr.mxu0 0.0
    %59 = vmatpush1.msra.mxu0 0.0
    %60 = vmatprep.subr.mxu0 0.0
    %61 = vmatpush1.msra.mxu0 0.0
    %62 = vmatprep.subr.mxu0 0.0
    %63 = vmatpush1.msra.mxu0 0.0
    %64 = vmatprep.subr.mxu0 0.0
    %65 = vmatpush1.msra.mxu0 0.0
    %66 = vmatprep.subr.mxu0 0.0
    %67 = vmatpush1.msra.mxu0 0.0
    %68 = vmatprep.subr.mxu0 0.0
    %69 = vmatpush1.msra.mxu0 0.0
    %70 = vmatprep.subr.mxu0 0.0
    %71 = vmatpush1.msra.mxu0 0.0
    %72 = vmatprep.subr.mxu0 0.0
    %73 = vmatpush1.msra.mxu0 0.0
    %74 = vmatprep.subr.mxu0 0.0
    %75 = vmatpush1.msra.mxu0 0.0
    %76 = vmatprep.subr.mxu0 0.0
    %77 = vmatpush1.msra.mxu0 0.0
    %78 = vmatprep.subr.mxu0 0.0
    %79 = vmatpush1.msra.mxu0 0.0
    %80 = vmatprep.subr.mxu0 0.0
    %81 = vmatpush1.msra.mxu0 0.0
    %82 = vmatprep.subr.mxu0 0.0
    %83 = vmatpush1.msra.mxu0 0.0
    %84 = vmatprep.subr.mxu0 0.0
    %85 = vmatpush1.msra.mxu0 0.0
    %86 = vmatprep.subr.mxu0 0.0
    %87 = vmatpush1.msra.mxu0 %v54
    %88 = vmatprep.subr.mxu0 0.0
    %89 = vmatpush2.msra.mxu0 0.0
    %90 = vmatprep.subr.mxu0 0.0
    %91 = vmatpush2.msra.mxu0 0.0
    %92 = vmatprep.subr.mxu0 0.0
    %93 = vmatpush2.msra.mxu0 0.0
    %94 = vmatprep.subr.mxu0 0.0
    %95 = vmatpush2.msra.mxu0 0.0
    %96 = vmatprep.subr.mxu0 0.0
    %97 = vmatpush2.msra.mxu0 0.0
    %98 = vmatprep.subr.mxu0 0.0
    %99 = vmatpush2.msra.mxu0 0.0
    %100 = vmatprep.subr.mxu0 0.0
    %101 = vmatpush2.msra.mxu0 0.0
    %102 = vmatprep.subr.mxu0 0.0
    %103 = vmatpush2.msra.mxu0 0.0
    %104 = vmatprep.subr.mxu0 0.0
    %105 = vmatpush2.msra.mxu0 0.0
    %106 = vmatprep.subr.mxu0 0.0
    %107 = vmatpush2.msra.mxu0 0.0
    %108 = vmatprep.subr.mxu0 0.0
    %109 = vmatpush2.msra.mxu0 0.0
    %110 = vmatprep.subr.mxu0 0.0
    %111 = vmatpush2.msra.mxu0 0.0
    %112 = vmatprep.subr.mxu0 0.0
    %113 = vmatpush2.msra.mxu0 0.0
    %114 = vmatprep.subr.mxu0 0.0
    %115 = vmatpush2.msra.mxu0 0.0
    %116 = vmatprep.subr.mxu0 0.0
    %117 = vmatpush2.msra.mxu0 0.0
    %118 = vmatprep.subr.mxu0 0.0
    %119 = vmatpush2.msra.mxu0 0.0
    %120 = vmatprep.mubr.f32.mxu0 0.0
    %121 = vmatmul.mubr.f32.gmra.mxu0 %v41
    %v122 = vpop.f32.mrf.mxu0
    %v123 = vadd.f32 0.0, %v122
    %v124 = vpop.f32.mrf.mxu0
    %125 = vmatprep.mubr.f32.mxu0 0.0
    %126 = vmatmul.mubr.f32.gmra.mxu0 %v44
    %v127 = vpop.f32.mrf.mxu0
    %v128 = vadd.f32 0.0, %v127
    %v129 = vpop.f32.mrf.mxu0
    %130 = vmatprep.mubr.f32.mxu0 0.0
    %131 = vmatmul.mubr.f32.gmra.mxu0 %v47
    %v132 = vpop.f32.mrf.mxu0
    %v133 = vadd.f32 0.0, %v132
    %v134 = vpop.f32.mrf.mxu0
    %135 = vmatprep.mubr.f32.mxu0 0.0
    %136 = vmatmul.mubr.f32.gmra.mxu0 %v50
    %v137 = vpop.f32.mrf.mxu0
    %v138 = vadd.f32 0.0, %v137
    %v139 = vpop.f32.mrf.mxu0
    %140 = vdwg.mxu0
    %vm141 = vcmask 97280
    %v143 = vsel %vm141, %v18, 0
    %v146 = vsel %vm141, %v19, 0
    %v149 = vsel %vm141, %v20, 0
    %v152 = vsel %vm141, %v21, 0
    %v155 = vsel %vm52, %v16, 0
    %157 = vmatprep.subr.mxu0 0.0
    %158 = vmatpush1.msra.mxu0 0.0
    %159 = vmatprep.subr.mxu0 0.0
    %160 = vmatpush1.msra.mxu0 0.0
    %161 = vmatprep.subr.mxu0 0.0
    %162 = vmatpush1.msra.mxu0 0.0
    %163 = vmatprep.subr.mxu0 0.0
    %164 = vmatpush1.msra.mxu0 0.0
    %165 = vmatprep.subr.mxu0 0.0
    %166 = vmatpush1.msra.mxu0 0.0
    %167 = vmatprep.subr.mxu0 0.0
    %168 = vmatpush1.msra.mxu0 0.0
    %169 = vmatprep.subr.mxu0 0.0
    %170 = vmatpush1.msra.mxu0 0.0
    %171 = vmatprep.subr.mxu0 0.0
    %172 = vmatpush1.msra.mxu0 0.0
    %173 = vmatprep.subr.mxu0 0.0
    %174 = vmatpush1.msra.mxu0 0.0
    %175 = vmatprep.subr.mxu0 0.0
    %176 = vmatpush1.msra.mxu0 0.0
    %177 = vmatprep.subr.mxu0 0.0
    %178 = vmatpush1.msra.mxu0 0.0
    %179 = vmatprep.subr.mxu0 0.0
    %180 = vmatpush1.msra.mxu0 0.0
    %181 = vmatprep.subr.mxu0 0.0
    %182 = vmatpush1.msra.mxu0 0.0
    %183 = vmatprep.subr.mxu0 0.0
    %184 = vmatpush1.msra.mxu0 0.0
    %185 = vmatprep.subr.mxu0 0.0
    %186 = vmatpush1.msra.mxu0 %v155
    %187 = vmatprep.subr.mxu0 0.0
    %188 = vmatpush1.msra.mxu0 %v15
    %189 = vmatprep.subr.mxu0 0.0
    %190 = vmatpush2.msra.mxu0 0.0
    %191 = vmatprep.subr.mxu0 0.0
    %192 = vmatpush2.msra.mxu0 0.0
    %193 = vmatprep.subr.mxu0 0.0
    %194 = vmatpush2.msra.mxu0 0.0
    %195 = vmatprep.subr.mxu0 0.0
    %196 = vmatpush2.msra.mxu0 0.0
    %197 = vmatprep.subr.mxu0 0.0
    %198 = vmatpush2.msra.mxu0 0.0
    %199 = vmatprep.subr.mxu0 0.0
    %200 = vmatpush2.msra.mxu0 0.0
    %201 = vmatprep.subr.mxu0 0.0
    %202 = vmatpush2.msra.mxu0 0.0
    %203 = vmatprep.subr.mxu0 0.0
    %204 = vmatpush2.msra.mxu0 0.0
    %205 = vmatprep.subr.mxu0 0.0
    %206 = vmatpush2.msra.mxu0 0.0
    %207 = vmatprep.subr.mxu0 0.0
    %208 = vmatpush2.msra.mxu0 0.0
    %209 = vmatprep.subr.mxu0 0.0
    %210 = vmatpush2.msra.mxu0 0.0
    %211 = vmatprep.subr.mxu0 0.0
    %212 = vmatpush2.msra.mxu0 0.0
    %213 = vmatprep.subr.mxu0 0.0
    %214 = vmatpush2.msra.mxu0 0.0
    %215 = vmatprep.subr.mxu0 0.0
    %216 = vmatpush2.msra.mxu0 0.0
    %217 = vmatprep.subr.mxu0 0.0
    %218 = vmatpush2.msra.mxu0 0.0
    %219 = vmatprep.subr.mxu0 0.0
    %220 = vmatpush2.msra.mxu0 0.0
    %221 = vmatprep.mubr.f32.mxu0 0.0
    %222 = vmatmul.mubr.f32.gmra.mxu0 %v143
    %v223 = vpop.f32.mrf.mxu0
    %v224 = vadd.f32 %v123, %v223
    %v225 = vpop.f32.mrf.mxu0
    %226 = vmatprep.mubr.f32.mxu0 0.0
    %227 = vmatmul.mubr.f32.gmra.mxu0 %v146
    %v228 = vpop.f32.mrf.mxu0
    %v229 = vadd.f32 %v128, %v228
    %v230 = vpop.f32.mrf.mxu0
    %231 = vmatprep.mubr.f32.mxu0 0.0
    %232 = vmatmul.mubr.f32.gmra.mxu0 %v149
    %v233 = vpop.f32.mrf.mxu0
    %v234 = vadd.f32 %v133, %v233
    %v235 = vpop.f32.mrf.mxu0
    %236 = vmatprep.mubr.f32.mxu0 0.0
    %237 = vmatmul.mubr.f32.gmra.mxu0 %v152
    %v238 = vpop.f32.mrf.mxu0
    %v239 = vadd.f32 %v138, %v238
    %v240 = vpop.f32.mrf.mxu0
    %241 = vdwg.mxu0
    %243 = vset.pattern.permute.xlu0 0
    %244 = vperm.xlu0 %243, %v34
    %v245 = vpop.permute.xlu0 %244
    %248 = vset.pattern.permute.xlu0 0
    %249 = vperm.xlu0 %248, %v35
    %v250 = vpop.permute.xlu0 %249
    %253 = vset.pattern.permute.xlu0 0
    %254 = vperm.xlu0 %253, %v36
    %v255 = vpop.permute.xlu0 %254
    %258 = vset.pattern.permute.xlu0 0
    %259 = vperm.xlu0 %258, %v37
    %v260 = vpop.permute.xlu0 %259
    %v262 = vadd.f32 %v224, %v245
    %v263 = vadd.f32 %v229, %v250
    %v264 = vadd.f32 %v234, %v255
    %v265 = vadd.f32 %v239, %v260
    %v266 = vmax.f32 %v262, 0.0
    %v267 = vmax.f32 %v263, 0.0
    %v268 = vmax.f32 %v264, 0.0
    %v269 = vmax.f32 %v265, 0.0
    %270 = vset.pattern.permute.xlu0 1
    %271 = vperm.xlu0 %270, %v34
    %v272 = vpop.permute.xlu0 %271
    %274 = vset.pattern.permute.xlu0 1
    %275 = vperm.xlu0 %274, %v35
    %v276 = vpop.permute.xlu0 %275
    %278 = vset.pattern.permute.xlu0 1
    %279 = vperm.xlu0 %278, %v36
    %v280 = vpop.permute.xlu0 %279
    %282 = vset.pattern.permute.xlu0 1
    %283 = vperm.xlu0 %282, %v37
    %v284 = vpop.permute.xlu0 %283
    %vm286 = vcmask 261120
    %v288 = vsel %vm286, %v26, 0
    %v291 = vsel %vm286, %v27, 0
    %v294 = vsel %vm286, %v28, 0
    %v297 = vsel %vm286, %v29, 0
    %299 = vmatprep.subr.mxu0 0.0
    %300 = vmatpush1.msra.mxu0 0.0
    %301 = vmatprep.subr.mxu0 0.0
    %302 = vmatpush1.msra.mxu0 0.0
    %303 = vmatprep.subr.mxu0 0.0
    %304 = vmatpush1.msra.mxu0 0.0
    %305 = vmatprep.subr.mxu0 0.0
    %306 = vmatpush1.msra.mxu0 0.0
    %307 = vmatprep.subr.mxu0 0.0
    %308 = vmatpush1.msra.mxu0 0.0
    %309 = vmatprep.subr.mxu0 0.0
    %310 = vmatpush1.msra.mxu0 0.0
    %311 = vmatprep.subr.mxu0 0.0
    %312 = vmatpush1.msra.mxu0 0.0
    %313 = vmatprep.subr.mxu0 0.0
    %314 = vmatpush1.msra.mxu0 0.0
    %315 = vmatprep.subr.mxu0 0.0
    %316 = vmatpush1.msra.mxu0 0.0
    %317 = vmatprep.subr.mxu0 0.0
    %318 = vmatpush1.msra.mxu0 0.0
    %319 = vmatprep.subr.mxu0 0.0
    %320 = vmatpush1.msra.mxu0 0.0
    %321 = vmatprep.subr.mxu0 0.0
    %322 = vmatpush1.msra.mxu0 0.0
    %323 = vmatprep.subr.mxu0 0.0
    %324 = vmatpush1.msra.mxu0 %v269
    %325 = vmatprep.subr.mxu0 0.0
    %326 = vmatpush1.msra.mxu0 %v268
    %327 = vmatprep.subr.mxu0 0.0
    %328 = vmatpush1.msra.mxu0 %v267
    %329 = vmatprep.subr.mxu0 0.0
    %330 = vmatpush1.msra.mxu0 %v266
    %331 = vmatprep.subr.mxu0 0.0
    %332 = vmatpush2.msra.mxu0 0.0
    %333 = vmatprep.subr.mxu0 0.0
    %334 = vmatpush2.msra.mxu0 0.0
    %335 = vmatprep.subr.mxu0 0.0
    %336 = vmatpush2.msra.mxu0 0.0
    %337 = vmatprep.subr.mxu0 0.0
    %338 = vmatpush2.msra.mxu0 0.0
    %339 = vmatprep.subr.mxu0 0.0
    %340 = vmatpush2.msra.mxu0 0.0
    %341 = vmatprep.subr.mxu0 0.0
    %342 = vmatpush2.msra.mxu0 0.0
    %343 = vmatprep.subr.mxu0 0.0
    %344 = vmatpush2.msra.mxu0 0.0
    %345 = vmatprep.subr.mxu0 0.0
    %346 = vmatpush2.msra.mxu0 0.0
    %347 = vmatprep.subr.mxu0 0.0
    %348 = vmatpush2.msra.mxu0 0.0
    %349 = vmatprep.subr.mxu0 0.0
    %350 = vmatpush2.msra.mxu0 0.0
    %351 = vmatprep.subr.mxu0 0.0
    %352 = vmatpush2.msra.mxu0 0.0
    %353 = vmatprep.subr.mxu0 0.0
    %354 = vmatpush2.msra.mxu0 0.0
    %355 = vmatprep.subr.mxu0 0.0
    %356 = vmatpush2.msra.mxu0 0.0
    %357 = vmatprep.subr.mxu0 0.0
    %358 = vmatpush2.msra.mxu0 0.0
    %359 = vmatprep.subr.mxu0 0.0
    %360 = vmatpush2.msra.mxu0 0.0
    %361 = vmatprep.subr.mxu0 0.0
    %362 = vmatpush2.msra.mxu0 0.0
    %363 = vmatprep.mubr.f32.mxu0 0.0
    %364 = vmatmul.mubr.f32.gmra.mxu0 %v288
    %v365 = vpop.f32.mrf.mxu0
    %v366 = vadd.f32 %v272, %v365
    %v367 = vpop.f32.mrf.mxu0
    %368 = vmatprep.mubr.f32.mxu0 0.0
    %369 = vmatmul.mubr.f32.gmra.mxu0 %v291
    %v370 = vpop.f32.mrf.mxu0
    %v371 = vadd.f32 %v276, %v370
    %v372 = vpop.f32.mrf.mxu0
    %373 = vmatprep.mubr.f32.mxu0 0.0
    %374 = vmatmul.mubr.f32.gmra.mxu0 %v294
    %v375 = vpop.f32.mrf.mxu0
    %v376 = vadd.f32 %v280, %v375
    %v377 = vpop.f32.mrf.mxu0
    %378 = vmatprep.mubr.f32.mxu0 0.0
    %379 = vmatmul.mubr.f32.gmra.mxu0 %v297
    %v380 = vpop.f32.mrf.mxu0
    %v381 = vadd.f32 %v284, %v380
    %v382 = vpop.f32.mrf.mxu0
    %383 = vdwg.mxu0
    %v384 = vmax.f32 %v366, 0.0
    %v385 = vmax.f32 %v371, 0.0
    %v386 = vmax.f32 %v376, 0.0
    %v387 = vmax.f32 %v381, 0.0
    %388 = vset.pattern.permute.xlu0 2
    %389 = vperm.xlu0 %388, %v34
    %v390 = vpop.permute.xlu0 %389
    %392 = vset.pattern.permute.xlu0 2
    %393 = vperm.xlu0 %392, %v35
    %v394 = vpop.permute.xlu0 %393
    %396 = vset.pattern.permute.xlu0 2
    %397 = vperm.xlu0 %396, %v36
    %v398 = vpop.permute.xlu0 %397
    %400 = vset.pattern.permute.xlu0 2
    %401 = vperm.xlu0 %400, %v37
    %v402 = vpop.permute.xlu0 %401
    %v405 = vsel %vm286, %v30, 0
    %v408 = vsel %vm286, %v31, 0
    %v411 = vsel %vm286, %v32, 0
    %v414 = vsel %vm286, %v33, 0
    %416 = vmatprep.subr.mxu0 0.0
    %417 = vmatpush1.msra.mxu0 0.0
    %418 = vmatprep.subr.mxu0 0.0
    %419 = vmatpush1.msra.mxu0 0.0
    %420 = vmatprep.subr.mxu0 0.0
    %421 = vmatpush1.msra.mxu0 0.0
    %422 = vmatprep.subr.mxu0 0.0
    %423 = vmatpush1.msra.mxu0 0.0
    %424 = vmatprep.subr.mxu0 0.0
    %425 = vmatpush1.msra.mxu0 0.0
    %426 = vmatprep.subr.mxu0 0.0
    %427 = vmatpush1.msra.mxu0 0.0
    %428 = vmatprep.subr.mxu0 0.0
    %429 = vmatpush1.msra.mxu0 0.0
    %430 = vmatprep.subr.mxu0 0.0
    %431 = vmatpush1.msra.mxu0 0.0
    %432 = vmatprep.subr.mxu0 0.0
    %433 = vmatpush1.msra.mxu0 0.0
    %434 = vmatprep.subr.mxu0 0.0
    %435 = vmatpush1.msra.mxu0 0.0
    %436 = vmatprep.subr.mxu0 0.0
    %437 = vmatpush1.msra.mxu0 0.0
    %438 = vmatprep.subr.mxu0 0.0
    %439 = vmatpush1.msra.mxu0 0.0
    %440 = vmatprep.subr.mxu0 0.0
    %441 = vmatpush1.msra.mxu0 %v387
    %442 = vmatprep.subr.mxu0 0.0
    %443 = vmatpush1.msra.mxu0 %v386
    %444 = vmatprep.subr.mxu0 0.0
    %445 = vmatpush1.msra.mxu0 %v385
    %446 = vmatprep.subr.mxu0 0.0
    %447 = vmatpush1.msra.mxu0 %v384
    %448 = vmatprep.subr.mxu0 0.0
    %449 = vmatpush2.msra.mxu0 0.0
    %450 = vmatprep.subr.mxu0 0.0
    %451 = vmatpush2.msra.mxu0 0.0
    %452 = vmatprep.subr.mxu0 0.0
    %453 = vmatpush2.msra.mxu0 0.0
    %454 = vmatprep.subr.mxu0 0.0
    %455 = vmatpush2.msra.mxu0 0.0
    %456 = vmatprep.subr.mxu0 0.0
    %457 = vmatpush2.msra.mxu0 0.0
    %458 = vmatprep.subr.mxu0 0.0
    %459 = vmatpush2.msra.mxu0 0.0
    %460 = vmatprep.subr.mxu0 0.0
    %461 = vmatpush2.msra.mxu0 0.0
    %462 = vmatprep.subr.mxu0 0.0
    %463 = vmatpush2.msra.mxu0 0.0
    %464 = vmatprep.subr.mxu0 0.0
    %465 = vmatpush2.msra.mxu0 0.0
    %466 = vmatprep.subr.mxu0 0.0
    %467 = vmatpush2.msra.mxu0 0.0
    %468 = vmatprep.subr.mxu0 0.0
    %469 = vmatpush2.msra.mxu0 0.0
    %470 = vmatprep.subr.mxu0 0.0
    %471 = vmatpush2.msra.mxu0 0.0
    %472 = vmatprep.subr.mxu0 0.0
    %473 = vmatpush2.msra.mxu0 0.0
    %474 = vmatprep.subr.mxu0 0.0
    %475 = vmatpush2.msra.mxu0 0.0
    %476 = vmatprep.subr.mxu0 0.0
    %477 = vmatpush2.msra.mxu0 0.0
    %478 = vmatprep.subr.mxu0 0.0
    %479 = vmatpush2.msra.mxu0 0.0
    %480 = vmatprep.mubr.f32.mxu0 0.0
    %481 = vmatmul.mubr.f32.gmra.mxu0 %v405
    %v482 = vpop.f32.mrf.mxu0
    %v483 = vadd.f32 %v390, %v482
    %v484 = vpop.f32.mrf.mxu0
    %485 = vmatprep.mubr.f32.mxu0 0.0
    %486 = vmatmul.mubr.f32.gmra.mxu0 %v408
    %v487 = vpop.f32.mrf.mxu0
    %v488 = vadd.f32 %v394, %v487
    %v489 = vpop.f32.mrf.mxu0
    %490 = vmatprep.mubr.f32.mxu0 0.0
    %491 = vmatmul.mubr.f32.gmra.mxu0 %v411
    %v492 = vpop.f32.mrf.mxu0
    %v493 = vadd.f32 %v398, %v492
    %v494 = vpop.f32.mrf.mxu0
    %495 = vmatprep.mubr.f32.mxu0 0.0
    %496 = vmatmul.mubr.f32.gmra.mxu0 %v414
    %v497 = vpop.f32.mrf.mxu0
    %v498 = vadd.f32 %v402, %v497
    %v499 = vpop.f32.mrf.mxu0
    %500 = vdwg.mxu0
    %v501 = vmax.f32 %v483, 0.0
    %v502 = vmax.f32 %v488, 0.0
    %v503 = vmax.f32 %v493, 0.0
    %v504 = vmax.f32 %v498, 0.0
    %505 = vset.pattern.permute.xlu0 3
    %506 = vperm.xlu0 %505, %v34
    %v507 = vpop.permute.xlu0 %506
    %509 = vset.pattern.permute.xlu0 3
    %510 = vperm.xlu0 %509, %v35
    %v511 = vpop.permute.xlu0 %510
    %513 = vset.pattern.permute.xlu0 3
    %514 = vperm.xlu0 %513, %v36
    %v515 = vpop.permute.xlu0 %514
    %517 = vset.pattern.permute.xlu0 3
    %518 = vperm.xlu0 %517, %v37
    %v519 = vpop.permute.xlu0 %518
    %v521 = vmul.f32 %v507, %v501
    %v522 = vmul.f32 %v511, %v502
    %v523 = vmul.f32 %v515, %v503
    %v524 = vmul.f32 %v519, %v504
    %v525 = vadd.f32 %v521, %v522
    %v526 = vadd.f32 %v525, %v523
    %v527 = vadd.f32 %v526, %v524
    %v528 = vrot.slane %v527, 4
    %v529 = vadd.f32 %v527, %v528
    %v530 = vrot.slane %v529, 2
    %v531 = vadd.f32 %v529, %v530
    %v532 = vrot.slane %v531, 1
    %v533 = vadd.f32 %v531, %v532
    %535 = vset.pattern.permute.xlu0 4
    %536 = vperm.xlu0 %535, %v38
    %v537 = vpop.permute.xlu0 %536
    %v539 = vadd.f32 %v533, %v537
    %540 = vst [vmem:[#allocation2] sm:$0x1] %v539
    // Predicated region
    $region14: #{tpu_custom_call.1} parent=1 // pred_check
      _
    $region15: #{tpu_custom_call.1} parent=1 // pred_check_branch
      %542 = sbr.rel (0) target = $region17
    $region16: #{tpu_custom_call.1} parent=1 // pred_region
      %s544 = ssub.s32 16, 16
      %545 = vsyncadd [#allocation3], %s544
      %s547 = sshll.u32 [#allocation2], 4
      %s548 = int_to_ptr.vmem [resolvable:$true] %s547
      %550 = dma.vmem_to_hbm [thread:$0]  %s548, 16, %s3, [#allocation3]
    $region17: #{tpu_custom_call.1} parent=1 // pred_fallthru
      _
    // Predicated region
    $region18: #{tpu_custom_call.1} parent=1 // pred_check
      _
    $region19: #{tpu_custom_call.1} parent=1 // pred_check_branch
      %552 = sbr.rel (0) target = $region21
    $region20: #{tpu_custom_call.1} parent=1 // pred_region
      %553 = dma.done [#allocation3], 16
    $region21: #{tpu_custom_call.1} parent=1 // pred_fallthru
      _
    %554 = vsyncpa [#allocation3], 1

</llo_original>
